<compile_context>
chip_gen: v7x
topology: tpu7x:2x2x1
jax: 0.10.0
libtpu: 0.0.40
codegen_flags: <defaults>
</compile_context>

<pallas_src>
import jax
import jax.numpy as jnp
from jax.experimental import pallas as pl
from jax.experimental.pallas import tpu as pltpu

HIDDEN = 64
SLAB_ROWS = 72          # padded to a multiple of 8 sublanes
ROW_W1 = 0              # rows 0..3   : W1  (4, 64)
ROW_B1 = 4              # row  4      : b1  (64,)
ROW_B2 = 5              # row  5      : b2  (64,)
ROW_W3 = 6              # row  6      : W3^T (64,)
ROW_W2 = 8              # rows 8..71  : W2  (64, 64)  -- 8-aligned start


def critic_kernel(x_ref, slab_ref, b3_ref, o_ref):
    x = x_ref[...]                                          # (TB, 4) f32

    # ---- Layer 1 (VPU): relu(x @ W1 + b1) as 4 unrolled broadcast-FMAs ----
    h1 = slab_ref[ROW_B1:ROW_B1 + 1, :]                     # (1, 64) bias row
    for k in range(4):                                      # static unroll, K=4
        h1 = h1 + x[:, k:k + 1] * slab_ref[ROW_W1 + k:ROW_W1 + k + 1, :]
    h1 = jnp.maximum(h1, 0.0)                               # (TB, 64)

    # ---- Layer 2 (MXU): relu(h1 @ W2 + b2), the only real matmul ----
    w2 = slab_ref[ROW_W2:ROW_W2 + HIDDEN, :]                # (64, 64), aligned view
    h2 = jnp.dot(h1, w2, preferred_element_type=jnp.float32)
    h2 = jnp.maximum(h2 + slab_ref[ROW_B2:ROW_B2 + 1, :], 0.0)

    # ---- Layer 3 (VPU + XLU): h2 @ w3 + b3 as multiply + lane reduce ----
    w3_row = slab_ref[ROW_W3:ROW_W3 + 1, :]                 # (1, 64)
    out = jnp.sum(h2 * w3_row, axis=-1, keepdims=True) + b3_ref[0, 0]
    o_ref[...] = out                                        # (TB, 1)


def _round_up(n, m):
    return ((n + m - 1) // m) * m


def pack_params(params):
    """Pack (w1,b1,w2,b2,w3,b3) into one (72,64) VMEM slab + a (1,1) SMEM scalar."""
    w1, b1, w2, b2, w3, b3 = params
    slab = jnp.zeros((SLAB_ROWS, HIDDEN), jnp.float32)
    slab = slab.at[ROW_W1:ROW_W1 + 4, :].set(w1)
    slab = slab.at[ROW_B1, :].set(b1.reshape(HIDDEN))
    slab = slab.at[ROW_B2, :].set(b2.reshape(HIDDEN))
    slab = slab.at[ROW_W3, :].set(w3.reshape(HIDDEN))
    slab = slab.at[ROW_W2:ROW_W2 + HIDDEN, :].set(w2)
    return slab, jnp.reshape(b3, (1, 1)).astype(jnp.float32)


def critic_net_forward(x, params, tile_b=512):
    B = x.shape[0]
    slab, b3s = pack_params(params)

    # Tile the batch; per-step overhead (~0.35us) amortizes over >=512 rows, while
    # small demo batches just get a single full-size tile (multiple of 8 sublanes).
    tb = min(tile_b, _round_up(B, 8))
    bp = _round_up(B, tb)
    xp = x if bp == B else jnp.pad(x, ((0, bp - B), (0, 0)))

    out = pl.pallas_call(
        critic_kernel,
        out_shape=jax.ShapeDtypeStruct((bp, 1), jnp.float32),
        grid=(bp // tb,),
        in_specs=[
            pl.BlockSpec((tb, 4), lambda i: (i, 0)),              # batch tile of x
            pl.BlockSpec((SLAB_ROWS, HIDDEN), lambda i: (0, 0)),  # resident weights
            pl.BlockSpec(memory_space=pltpu.MemorySpace.SMEM),    # b3 scalar
        ],
        out_specs=pl.BlockSpec((tb, 1), lambda i: (i, 0)),
        compiler_params=pltpu.CompilerParams(
            dimension_semantics=("parallel",)),
    )(xp, slab, b3s)
    return out[:B]


def init_params(key):
    """nn.Linear-style init; weights stored [in, out] (transposed vs PyTorch)."""
    ks = jax.random.split(key, 6)

    def uniform(k, shape, fan_in):
        bound = 1.0 / jnp.sqrt(float(fan_in))
        return jax.random.uniform(k, shape, jnp.float32, -bound, bound)

    w1 = uniform(ks[0], (4, 64), 4)
    b1 = uniform(ks[1], (64,), 4)
    w2 = uniform(ks[2], (64, 64), 64)
    b2 = uniform(ks[3], (64,), 64)
    w3 = uniform(ks[4], (64, 1), 64)
    b3 = uniform(ks[5], (1,), 64)
    return (w1, b1, w2, b2, w3, b3)


def reference_forward(x, params):
    w1, b1, w2, b2, w3, b3 = params
    hp = jax.lax.Precision.HIGHEST
    h1 = jnp.maximum(jnp.dot(x, w1, precision=hp) + b1, 0.0)
    h2 = jnp.maximum(jnp.dot(h1, w2, precision=hp) + b2, 0.0)
    return jnp.dot(h2, w3, precision=hp) + b3


if __name__ == "__main__":
    key = jax.random.PRNGKey(0)
    pkey, xkey1, xkey2 = jax.random.split(key, 3)
    params = init_params(pkey)

    # Small CartPole-style batch: 16 observations of 4-dim state, single tile.
    x_small = jax.random.normal(xkey1, (16, 4), jnp.float32)
    out_small = jax.block_until_ready(critic_net_forward(x_small, params))
    ref_small = reference_forward(x_small, params)
    assert out_small.shape == (16, 1), out_small.shape
    assert jnp.allclose(out_small, ref_small, atol=1e-4, rtol=1e-4), "small-batch mismatch"

    # Exercise the batch grid + ragged-batch padding path: 200 rows, 64-row tiles.
    x_big = jax.random.normal(xkey2, (200, 4), jnp.float32)
    out_big = jax.block_until_ready(critic_net_forward(x_big, params, tile_b=64))
    ref_big = reference_forward(x_big, params)
    assert out_big.shape == (200, 1), out_big.shape
    assert jnp.allclose(out_big, ref_big, atol=1e-4, rtol=1e-4), "tiled-batch mismatch"

    print("KERNEL_OK")
</pallas_src>

<mosaic_0001>
module attributes {stable_mosaic.version = 11 : i64} {
  func.func @critic_kernel(%arg0: i32, %arg1: memref<16x4xf32, #tpu.memory_space<vmem>>, %arg2: memref<72x64xf32, #tpu.memory_space<vmem>>, %arg3: memref<1x1xf32, #tpu.memory_space<smem>>, %arg4: memref<16x1xf32, #tpu.memory_space<vmem>>) attributes {dimension_semantics = [#tpu.dimension_semantics<parallel>], iteration_bounds = array<i64: 1>, scalar_prefetch = 0 : i64, scratch_operands = 0 : i64, tpu.core_type = #tpu.core_type<tc>, window_params = [{transform_indices = @transform_0, window_bounds = array<i64: 16, 4>}, {pipeline_mode = #tpu.pipeline_mode<synchronous>, transform_indices = @transform_1, window_bounds = array<i64: 72, 64>}, {transform_indices = @transform_2, window_bounds = array<i64: 1, 1>}, {transform_indices = @transform_3, window_bounds = array<i64: 16, 1>}]} {
    %c0 = arith.constant 0 : index
    %c0_0 = arith.constant 0 : index
    %0 = vector.load %arg1[%c0, %c0_0] : memref<16x4xf32, #tpu.memory_space<vmem>>, vector<16x4xf32>
    %c4 = arith.constant 4 : index
    %c0_1 = arith.constant 0 : index
    %1 = vector.load %arg2[%c4, %c0_1] : memref<72x64xf32, #tpu.memory_space<vmem>>, vector<1x64xf32>
    %2 = vector.extract_strided_slice %0 {offsets = [0, 0], sizes = [16, 1], strides = [1, 1]} : vector<16x4xf32> to vector<16x1xf32>
    %c0_2 = arith.constant 0 : index
    %c0_3 = arith.constant 0 : index
    %3 = vector.load %arg2[%c0_2, %c0_3] : memref<72x64xf32, #tpu.memory_space<vmem>>, vector<1x64xf32>
    %4 = vector.broadcast %2 : vector<16x1xf32> to vector<16x64xf32>
    %5 = vector.broadcast %3 : vector<1x64xf32> to vector<16x64xf32>
    %6 = arith.mulf %4, %5 : vector<16x64xf32>
    %7 = vector.broadcast %1 : vector<1x64xf32> to vector<16x64xf32>
    %8 = arith.addf %7, %6 : vector<16x64xf32>
    %9 = vector.extract_strided_slice %0 {offsets = [0, 1], sizes = [16, 1], strides = [1, 1]} : vector<16x4xf32> to vector<16x1xf32>
    %c1 = arith.constant 1 : index
    %c0_4 = arith.constant 0 : index
    %10 = vector.load %arg2[%c1, %c0_4] : memref<72x64xf32, #tpu.memory_space<vmem>>, vector<1x64xf32>
    %11 = vector.broadcast %9 : vector<16x1xf32> to vector<16x64xf32>
    %12 = vector.broadcast %10 : vector<1x64xf32> to vector<16x64xf32>
    %13 = arith.mulf %11, %12 : vector<16x64xf32>
    %14 = arith.addf %8, %13 : vector<16x64xf32>
    %15 = vector.extract_strided_slice %0 {offsets = [0, 2], sizes = [16, 1], strides = [1, 1]} : vector<16x4xf32> to vector<16x1xf32>
    %c2 = arith.constant 2 : index
    %c0_5 = arith.constant 0 : index
    %16 = vector.load %arg2[%c2, %c0_5] : memref<72x64xf32, #tpu.memory_space<vmem>>, vector<1x64xf32>
    %17 = vector.broadcast %15 : vector<16x1xf32> to vector<16x64xf32>
    %18 = vector.broadcast %16 : vector<1x64xf32> to vector<16x64xf32>
    %19 = arith.mulf %17, %18 : vector<16x64xf32>
    %20 = arith.addf %14, %19 : vector<16x64xf32>
    %21 = vector.extract_strided_slice %0 {offsets = [0, 3], sizes = [16, 1], strides = [1, 1]} : vector<16x4xf32> to vector<16x1xf32>
    %c3 = arith.constant 3 : index
    %c0_6 = arith.constant 0 : index
    %22 = vector.load %arg2[%c3, %c0_6] : memref<72x64xf32, #tpu.memory_space<vmem>>, vector<1x64xf32>
    %23 = vector.broadcast %21 : vector<16x1xf32> to vector<16x64xf32>
    %24 = vector.broadcast %22 : vector<1x64xf32> to vector<16x64xf32>
    %25 = arith.mulf %23, %24 : vector<16x64xf32>
    %26 = arith.addf %20, %25 : vector<16x64xf32>
    %cst = arith.constant 0.000000e+00 : f32
    %27 = vector.broadcast %cst : f32 to vector<16x64xf32>
    %28 = arith.maximumf %26, %27 : vector<16x64xf32>
    %c8 = arith.constant 8 : index
    %c0_7 = arith.constant 0 : index
    %29 = vector.load %arg2[%c8, %c0_7] : memref<72x64xf32, #tpu.memory_space<vmem>>, vector<64x64xf32>
    %cst_8 = arith.constant dense<0.000000e+00> : vector<16x64xf32>
    %30 = tpu.matmul %28, %29, %cst_8 {dimension_numbers = #tpu.dot_dimension_numbers<[1], [0], [0], [1], [0, 0, 1, 1], [], []>} : vector<16x64xf32>, vector<64x64xf32>, vector<16x64xf32> -> vector<16x64xf32>
    %c5 = arith.constant 5 : index
    %c0_9 = arith.constant 0 : index
    %31 = vector.load %arg2[%c5, %c0_9] : memref<72x64xf32, #tpu.memory_space<vmem>>, vector<1x64xf32>
    %32 = vector.broadcast %31 : vector<1x64xf32> to vector<16x64xf32>
    %33 = arith.addf %30, %32 : vector<16x64xf32>
    %cst_10 = arith.constant 0.000000e+00 : f32
    %34 = vector.broadcast %cst_10 : f32 to vector<16x64xf32>
    %35 = arith.maximumf %33, %34 : vector<16x64xf32>
    %c6 = arith.constant 6 : index
    %c0_11 = arith.constant 0 : index
    %36 = vector.load %arg2[%c6, %c0_11] : memref<72x64xf32, #tpu.memory_space<vmem>>, vector<1x64xf32>
    %37 = vector.broadcast %36 : vector<1x64xf32> to vector<16x64xf32>
    %38 = arith.mulf %35, %37 : vector<16x64xf32>
    %cst_12 = arith.constant dense<0.000000e+00> : vector<16xf32>
    %39 = vector.multi_reduction <add>, %38, %cst_12 [1] : vector<16x64xf32> to vector<16xf32>
    %40 = vector.shape_cast %39 : vector<16xf32> to vector<16x1xf32>
    %c0_13 = arith.constant 0 : index
    %c0_14 = arith.constant 0 : index
    %41 = memref.load %arg3[%c0_13, %c0_14] : memref<1x1xf32, #tpu.memory_space<smem>>
    %42 = vector.broadcast %41 : f32 to vector<16x1xf32>
    %43 = arith.addf %40, %42 : vector<16x1xf32>
    %c0_15 = arith.constant 0 : index
    %c0_16 = arith.constant 0 : index
    %44 = vector.load %arg4[%c0_15, %c0_16] : memref<16x1xf32, #tpu.memory_space<vmem>>, vector<16x1xf32>
    tpu.vector_store %arg4[%c0_15, %c0_16], %43 {strides = array<i32>} : memref<16x1xf32, #tpu.memory_space<vmem>>, vector<16x1xf32>,
    return
  }
  func.func @transform_0(%arg0: i32) -> (i32, i32) {
    %c0_i32 = arith.constant 0 : i32
    %c0_i32_0 = arith.constant 0 : i32
    return %arg0, %c0_i32 : i32, i32
  }
  func.func @transform_1(%arg0: i32) -> (i32, i32) {
    %c0_i32 = arith.constant 0 : i32
    %c0_i32_0 = arith.constant 0 : i32
    %c0_i32_1 = arith.constant 0 : i32
    return %c0_i32, %c0_i32_0 : i32, i32
  }
  func.func @transform_2(%arg0: i32) -> (i32, i32) {
    %c0_i32 = arith.constant 0 : i32
    %c0_i32_0 = arith.constant 0 : i32
    %c0_i32_1 = arith.constant 0 : i32
    return %c0_i32, %c0_i32_0 : i32, i32
  }
  func.func @transform_3(%arg0: i32) -> (i32, i32) {
    %c0_i32 = arith.constant 0 : i32
    %c0_i32_0 = arith.constant 0 : i32
    return %arg0, %c0_i32 : i32, i32
  }
}

</mosaic_0001>

<llo_original>
// kernel: tpu_custom_call.1
$region0: #{tpu_custom_call.1}
  #allocation0 [shape = 'u32[]', space=smem, size = 0x4, offset = 0x4, fixed_abs, tag = 'smem constant byte address 0x4 - core index']
  #allocation1 [shape = 'u32[144,128]{1,0:T(1,128)}', space=vmem, size = 0x12000, scoped, tag = 'internal scratch']
  #allocation2 [shape = 'f32[1,1]{1,0:T(1,128)S(6)}', space=smem, size = 0x200, scoped, tag = 'scoped memory for tpu_custom_call.1']
  %s0 = inlined_call_operand.vmem [shape: f32[16,4], index: 0, kind: input, shape index: {}]
  %s1 = inlined_call_operand.vmem [shape: f32[72,64], index: 1, kind: input, shape index: {}]
  %s2 = inlined_call_operand.<no memory space> [shape: f32[1,1], index: 2, kind: input, shape index: {}]
  %s3 = inlined_call_operand.vmem [shape: f32[16,1], index: 3, kind: output, shape index: {}]
  %s4 = sld [smem:[#allocation0]]
  $region22: #{tpu_custom_call.1} parent=0
    _
  %s6 = ssub.s32 1, %s4
  %s7 = scalar_select 0, %s6, %s4
  %8 = sst [smem:[#allocation2]] %s2
  // Predicated region
  $region2: #{tpu_custom_call.1} parent=0 // pred_check
    _
  $region3: #{tpu_custom_call.1} parent=0 // pred_check_branch
    %10 = sbr.rel (0) target = $region5
  $region4: #{tpu_custom_call.1} parent=0 // pred_region
    _
  $region5: #{tpu_custom_call.1} parent=0 // pred_fallthru
    _
  // Predicated region
  $region6: #{tpu_custom_call.1} parent=0 // pred_check
    _
  $region7: #{tpu_custom_call.1} parent=0 // pred_check_branch
    %12 = sbr.rel (0) target = $region9
  $region8: #{tpu_custom_call.1} parent=0 // pred_region
    _
  $region9: #{tpu_custom_call.1} parent=0 // pred_fallthru
    _
  // Predicated region
  $region10: #{tpu_custom_call.1} parent=0 // pred_check
    _
  $region11: #{tpu_custom_call.1} parent=0 // pred_check_branch
    %14 = sbr.rel (0) target = $region13
  $region12: #{tpu_custom_call.1} parent=0 // pred_region
    _
  $region13: #{tpu_custom_call.1} parent=0 // pred_fallthru
    _
  %v15 = vld [vmem:[%s0] sm:$0xff]
  %v16 = vld [vmem:[%s0 + $0x8] sm:$0xff]
  %v17 = vld [vmem:[%s1 + $0x4] sm:$0x1]
  %v18 = vld [vmem:[%s1] sm:$0x1]
  %20 = vset.pattern.permute.xlu0 0
  %21 = vperm.xlu0 %20, %v15
  %v22 = vpop.permute.xlu0 %21
  %25 = vset.pattern.permute.xlu0 0
  %26 = vperm.xlu0 %25, %v16
  %v27 = vpop.permute.xlu0 %26
  %v29 = vlaneseq
  %v30 = vshrl.u32 %v29, 7
  %v31 = vsub.s32 0, %v30
  %v32 = vrot.slane %v18, %v31
  %v33 = vmul.f32 %v22, %v32
  %v34 = vmul.f32 %v27, %v32
  %v35 = vlaneseq
  %v36 = vshrl.u32 %v35, 7
  %v37 = vsub.s32 0, %v36
  %v38 = vrot.slane %v17, %v37
  %v39 = vadd.f32 %v38, %v33
  %v40 = vadd.f32 %v38, %v34
  %v41 = vld [vmem:[%s1 + $0x1] sm:$0x1]
  %42 = vset.pattern.permute.xlu0 1
  %43 = vperm.xlu0 %42, %v15
  %v44 = vpop.permute.xlu0 %43
  %46 = vset.pattern.permute.xlu0 1
  %47 = vperm.xlu0 %46, %v16
  %v48 = vpop.permute.xlu0 %47
  %v50 = vlaneseq
  %v51 = vshrl.u32 %v50, 7
  %v52 = vsub.s32 0, %v51
  %v53 = vrot.slane %v41, %v52
  %v54 = vmul.f32 %v44, %v53
  %v55 = vmul.f32 %v48, %v53
  %v56 = vadd.f32 %v39, %v54
  %v57 = vadd.f32 %v40, %v55
  %v58 = vld [vmem:[%s1 + $0x2] sm:$0x1]
  %59 = vset.pattern.permute.xlu0 2
  %60 = vperm.xlu0 %59, %v15
  %v61 = vpop.permute.xlu0 %60
  %63 = vset.pattern.permute.xlu0 2
  %64 = vperm.xlu0 %63, %v16
  %v65 = vpop.permute.xlu0 %64
  %v67 = vlaneseq
  %v68 = vshrl.u32 %v67, 7
  %v69 = vsub.s32 0, %v68
  %v70 = vrot.slane %v58, %v69
  %v71 = vmul.f32 %v61, %v70
  %v72 = vmul.f32 %v65, %v70
  %v73 = vadd.f32 %v56, %v71
  %v74 = vadd.f32 %v57, %v72
  %v75 = vld [vmem:[%s1 + $0x3] sm:$0x1]
  %76 = vset.pattern.permute.xlu0 3
  %77 = vperm.xlu0 %76, %v15
  %v78 = vpop.permute.xlu0 %77
  %80 = vset.pattern.permute.xlu0 3
  %81 = vperm.xlu0 %80, %v16
  %v82 = vpop.permute.xlu0 %81
  %v84 = vlaneseq
  %v85 = vshrl.u32 %v84, 7
  %v86 = vsub.s32 0, %v85
  %v87 = vrot.slane %v75, %v86
  %v88 = vmul.f32 %v78, %v87
  %v89 = vmul.f32 %v82, %v87
  %v90 = vadd.f32 %v73, %v88
  %v91 = vadd.f32 %v74, %v89
  %v92 = vmax.f32 %v90, 0.0
  %v93 = vmax.f32 %v91, 0.0
  %v94 = vld [vmem:[%s1 + $0x8] sm:$0xff]
  %v95 = vld [vmem:[%s1 + $0x10] sm:$0xff]
  %v96 = vld [vmem:[%s1 + $0x18] sm:$0xff]
  %v97 = vld [vmem:[%s1 + $0x20] sm:$0xff]
  %v98 = vld [vmem:[%s1 + $0x28] sm:$0xff]
  %v99 = vld [vmem:[%s1 + $0x30] sm:$0xff]
  %v100 = vld [vmem:[%s1 + $0x38] sm:$0xff]
  %v101 = vld [vmem:[%s1 + $0x40] sm:$0xff]
  %v102 = vld [vmem:[%s1 + $0x5] sm:$0x1]
  %v103 = vlaneseq
  %v104 = vshrl.u32 %v103, 7
  %v105 = vsub.s32 0, %v104
  %v106 = vrot.slane %v102, %v105
  %vm107 = vcmask 523264
  %v109 = vsel %vm107, %v92, 0
  %v112 = vsel %vm107, %v93, 0
  %114 = vmatprep.subr.mxu0 0.0
  %115 = vmatpush1.msra.mxu0 %v94
  %116 = vmatprep.subr.mxu0 0.0
  %117 = vmatpush1.msra.mxu0 %v95
  %118 = vmatprep.subr.mxu0 0.0
  %119 = vmatpush1.msra.mxu0 %v96
  %120 = vmatprep.subr.mxu0 0.0
  %121 = vmatpush1.msra.mxu0 %v97
  %122 = vmatprep.subr.mxu0 0.0
  %123 = vmatpush1.msra.mxu0 %v98
  %124 = vmatprep.subr.mxu0 0.0
  %125 = vmatpush1.msra.mxu0 %v99
  %126 = vmatprep.subr.mxu0 0.0
  %127 = vmatpush1.msra.mxu0 %v100
  %128 = vmatprep.subr.mxu0 0.0
  %129 = vmatpush1.msra.mxu0 %v101
  %130 = vmatprep.subr.mxu0 0.0
  %131 = vmatpush1.msra.mxu0 0.0
  %132 = vmatprep.subr.mxu0 0.0
  %133 = vmatpush1.msra.mxu0 0.0
  %134 = vmatprep.subr.mxu0 0.0
  %135 = vmatpush1.msra.mxu0 0.0
  %136 = vmatprep.subr.mxu0 0.0
  %137 = vmatpush1.msra.mxu0 0.0
  %138 = vmatprep.subr.mxu0 0.0
  %139 = vmatpush1.msra.mxu0 0.0
  %140 = vmatprep.subr.mxu0 0.0
  %141 = vmatpush1.msra.mxu0 0.0
  %142 = vmatprep.subr.mxu0 0.0
  %143 = vmatpush1.msra.mxu0 0.0
  %144 = vmatprep.subr.mxu0 0.0
  %145 = vmatpush1.msra.mxu0 0.0
  %146 = vmatprep.subr.mxu0 0.0
  %147 = vmatpush1.msra.mxu0 0.0
  %148 = vmatprep.subr.mxu0 0.0
  %149 = vmatpush1.msra.mxu0 0.0
  %150 = vmatprep.subr.mxu0 0.0
  %151 = vmatpush1.msra.mxu0 0.0
  %152 = vmatprep.subr.mxu0 0.0
  %153 = vmatpush1.msra.mxu0 0.0
  %154 = vmatprep.subr.mxu0 0.0
  %155 = vmatpush1.msra.mxu0 0.0
  %156 = vmatprep.subr.mxu0 0.0
  %157 = vmatpush1.msra.mxu0 0.0
  %158 = vmatprep.subr.mxu0 0.0
  %159 = vmatpush1.msra.mxu0 0.0
  %160 = vmatprep.subr.mxu0 0.0
  %161 = vmatpush1.msra.mxu0 0.0
  %162 = vmatprep.subr.mxu0 0.0
  %163 = vmatpush1.msra.mxu0 0.0
  %164 = vmatprep.subr.mxu0 0.0
  %165 = vmatpush1.msra.mxu0 0.0
  %166 = vmatprep.subr.mxu0 0.0
  %167 = vmatpush1.msra.mxu0 0.0
  %168 = vmatprep.subr.mxu0 0.0
  %169 = vmatpush1.msra.mxu0 0.0
  %170 = vmatprep.subr.mxu0 0.0
  %171 = vmatpush1.msra.mxu0 0.0
  %172 = vmatprep.subr.mxu0 0.0
  %173 = vmatpush1.msra.mxu0 0.0
  %174 = vmatprep.subr.mxu0 0.0
  %175 = vmatpush1.msra.mxu0 0.0
  %176 = vmatprep.subr.mxu0 0.0
  %177 = vmatpush1.msra.mxu0 0.0
  %178 = vmatprep.mubr.f32.mxu0 0.0
  %179 = vmatmul.mubr.f32.gmra.mrb[0].mxu0 %v109
  %v180 = vpop.f32.mrb[0].mxu0
  %v181 = vadd.f32 %v106, %v180
  %v182 = vpop.f32.mrb[0].mxu0
  %183 = vmatprep.mubr.f32.mxu0 0.0
  %184 = vmatmul.mubr.f32.gmra.mrb[0].mxu0 %v112
  %v185 = vpop.f32.mrb[0].mxu0
  %v186 = vadd.f32 %v106, %v185
  %v187 = vpop.f32.mrb[0].mxu0
  %188 = vdwg.mxu0
  %v189 = vmax.f32 %v181, 0.0
  %v190 = vmax.f32 %v186, 0.0
  %v191 = vld [vmem:[%s1 + $0x6] sm:$0x1]
  %v192 = vlaneseq
  %v193 = vshrl.u32 %v192, 7
  %v194 = vsub.s32 0, %v193
  %v195 = vrot.slane %v191, %v194
  %v196 = vmul.f32 %v189, %v195
  %v197 = vmul.f32 %v190, %v195
  %v198 = vsel %vm107, %v196, 0.0
  %199 = vadd.xlane.f32.xlu0 %v198
  %v200 = vpop.xlane.xlu0 %199
  %v201 = vsel %vm107, %v197, 0.0
  %202 = vadd.xlane.f32.xlu0 %v201
  %v203 = vpop.xlane.xlu0 %202
  %s204 = sld [smem:[#allocation2]]
  %v205 = vstv %s204
  %v206 = vadd.f32 %v200, %v205
  %v207 = vadd.f32 %v203, %v205
  %vm208 = vcmask 7168
  %209 = vst.msk [vmem:[%s3] sm:$0xff] %vm208, %v206
  %210 = vst.msk [vmem:[%s3 + $0x8] sm:$0xff] %vm208, %v207
  // Predicated region
  $region14: #{tpu_custom_call.1} parent=0 // pred_check
    _
  $region15: #{tpu_custom_call.1} parent=0 // pred_check_branch
    %212 = sbr.rel (0) target = $region17
  $region16: #{tpu_custom_call.1} parent=0 // pred_region
    _
  $region17: #{tpu_custom_call.1} parent=0 // pred_fallthru
    _
  // Predicated region
  $region18: #{tpu_custom_call.1} parent=0 // pred_check
    _
  $region19: #{tpu_custom_call.1} parent=0 // pred_check_branch
    %214 = sbr.rel (0) target = $region21
  $region20: #{tpu_custom_call.1} parent=0 // pred_region
    _
  $region21: #{tpu_custom_call.1} parent=0 // pred_fallthru
    _

</llo_original>
